<compile_context>
chip_gen: v7x
topology: tpu7x:2x2x1
jax: 0.10.0
libtpu: 0.0.40
codegen_flags: <defaults>
</compile_context>

<pallas_src>
import jax
import jax.numpy as jnp
from jax import lax
from jax.experimental import pallas as pl
from jax.experimental.pallas import tpu as pltpu

WIN_SIZE = 7
K1 = 0.01
K2 = 0.03
LANES = 128


def _cdiv(a, b):
    return -(-a // b)


def _make_kernel(win, out_len, block_rows, valid_per_row,
                 blocks_per_split, last_data_block):
    w = float(win)
    ca2 = 2.0 * w / (w - 1.0)      # scale of (W*SXY - SX*SY) in 49*A2
    cb2 = w / (w - 1.0)            # scale of (W*(SXX+SYY) - (SX^2+SY^2)) in 49*B2

    def rl(v, k):
        # rl(v, k)[:, j] == v[:, (j + k) % LANES]   (lane rotation, XLU slot)
        return pltpu.roll(v, LANES - k, axis=1)

    def win_sum(v):
        # width-`win` moving sum along lanes via log-step shift-adds.
        sums = [v]                       # sums[p] = 2**p-wide moving sum
        width = 1
        while width * 2 <= win:
            sums.append(sums[-1] + rl(sums[-1], width))
            width *= 2
        total = None
        offset = 0
        rem = win
        for p in range(len(sums) - 1, -1, -1):
            wp = 1 << p
            if rem >= wp:
                term = sums[p] if offset == 0 else rl(sums[p], offset)
                total = term if total is None else total + term
                offset += wp
                rem -= wp
        return total

    def kernel(consts_ref, x_ref, y_ref, o_ref, acc_ref):
        c = pl.program_id(0)             # parallel split index
        i = pl.program_id(1)             # block index within the split

        @pl.when(i == 0)
        def _init():
            acc_ref[...] = jnp.zeros_like(acc_ref)

        c1w = consts_ref[0]              # win^2 * (k1 * data_range)^2
        c2w = consts_ref[1]              # win^2 * (k2 * data_range)^2

        x = x_ref[...]                   # (block_rows, 128) f32
        y = y_ref[...]

        # Raw window sums (no 1/win scaling needed).
        sx = win_sum(x)
        sy = win_sum(y)
        sxx = win_sum(x * x)
        syy = win_sum(y * y)
        sxy = win_sum(x * y)

        # SSIM terms, each scaled by win^2 (scale cancels in the ratio):
        #   A1' = 2*SX*SY + c1w
        #   B1' = SX^2 + SY^2 + c1w
        #   A2' = (2W/(W-1)) * (W*SXY - SX*SY) + c2w
        #   B2' = (W/(W-1))  * (W*(SXX+SYY) - (SX^2+SY^2)) + c2w
        pxx = sx * sx
        pyy = sy * sy
        pxy = sx * sy
        a1 = 2.0 * pxy + c1w
        b1 = pxx + pyy + c1w
        a2 = ca2 * (w * sxy - pxy) + c2w
        b2 = cb2 * (w * (sxx + syy) - (pxx + pyy)) + c2w

        num = a1 * a2
        den = b1 * b2                    # > 0 everywhere (Cauchy-Schwarz + c2w)
        # EUP approx reciprocal + one Newton-Raphson step (keeps f32 accuracy).
        r = pl.reciprocal(den, approx=True)
        r = r * (2.0 - den * r)
        s = num * r

        lane = lax.broadcasted_iota(jnp.int32, s.shape, 1)
        lane_ok = lane < valid_per_row               # constant per lane
        gb = c * blocks_per_split + i                # global row-block index

        def accumulate(mask):
            sm = jnp.where(mask, s, 0.0)
            acc_ref[...] += sm.reshape(-1, 8, LANES).sum(axis=0)

        # Interior blocks: every in-row lane is a valid window start.
        @pl.when(gb < last_data_block)
        def _interior():
            accumulate(lane_ok)

        # Boundary / padding blocks: also mask positions past out_len.
        @pl.when(gb >= last_data_block)
        def _tail():
            row = lax.broadcasted_iota(jnp.int32, s.shape, 0)
            pos = (gb * block_rows + row) * valid_per_row + lane
            accumulate(lane_ok & (pos < out_len))

        @pl.when(i == blocks_per_split - 1)
        def _finalize():
            o_ref[...] = acc_ref[...].reshape(1, 8, LANES)

    return kernel


def ssim1d(x: jnp.ndarray, y: jnp.ndarray,
           win_size: int = WIN_SIZE, k1: float = K1, k2: float = K2,
           block_rows: int = 2048, n_splits: int | None = None) -> jnp.ndarray:
    """Equivalent of SSIM1d().forward(x, y) with data_range=None, full=False."""
    assert x.ndim == 1 and y.ndim == 1, "x and y must be vectors"
    assert x.shape == y.shape, "x and y must have the same length"
    n = x.shape[0]
    assert n >= win_size
    assert 2 * (win_size - 1) <= LANES, "win_size too large for halo packing"
    out_len = n - win_size + 1
    valid_per_row = LANES - (win_size - 1)
    halo = win_size - 1

    xf = x.astype(jnp.float32)
    yf = y.astype(jnp.float32)

    # data_range = max(y); fold it into the SSIM constants (everything in the
    # numerator/denominator scales by data_range^2) instead of normalizing x,y
    # (which would cost two extra full HBM read+write passes).
    dr = jnp.max(yf)
    dr2 = dr * dr
    w2 = float(win_size * win_size)
    consts = jnp.stack([w2 * (k1 * k1) * dr2,
                        w2 * (k2 * k2) * dr2]).astype(jnp.float32)

    rows_needed = _cdiv(out_len, valid_per_row)

    # ---- block / split sizing ------------------------------------------------
    block_rows_max = max(8, (block_rows // 8) * 8)
    if n_splits is None:
        # 2-way split of the row blocks for v7x's two TensorCores once the
        # per-split work clearly dominates the per-step pipeline overhead.
        n_splits = 2 if rows_needed >= 1024 else 1
    n_splits = max(1, int(n_splits))

    rows_per_split = _cdiv(rows_needed, n_splits)
    blocks_per_split = _cdiv(rows_per_split, block_rows_max)
    block_rows = 8 * _cdiv(rows_per_split, 8 * blocks_per_split)
    total_blocks = n_splits * blocks_per_split
    r_pad = total_blocks * block_rows
    last_data_block = (rows_needed - 1) // block_rows

    # ---- halo repack to (r_pad, 128) -----------------------------------------
    # Row r holds elements [r*valid_per_row, r*valid_per_row + 128); built from
    # pad + reshape + slices + concat (lowers to copies, not an XLA gather).
    flat_len = (r_pad + 1) * valid_per_row

    def repack(v):
        vp = jnp.pad(v, (0, flat_len - n)).reshape(r_pad + 1, valid_per_row)
        return jnp.concatenate([vp[:-1], vp[1:, :halo]], axis=1)

    x2d = repack(xf)
    y2d = repack(yf)

    kernel = _make_kernel(win_size, out_len, block_rows, valid_per_row,
                          blocks_per_split, last_data_block)

    partial = pl.pallas_call(
        kernel,
        out_shape=jax.ShapeDtypeStruct((n_splits, 8, LANES), jnp.float32),
        grid_spec=pltpu.PrefetchScalarGridSpec(
            num_scalar_prefetch=1,
            grid=(n_splits, blocks_per_split),
            in_specs=[
                pl.BlockSpec((block_rows, LANES),
                             lambda c, i, consts: (c * blocks_per_split + i, 0)),
                pl.BlockSpec((block_rows, LANES),
                             lambda c, i, consts: (c * blocks_per_split + i, 0)),
            ],
            out_specs=pl.BlockSpec((1, 8, LANES),
                                   lambda c, i, consts: (c, 0, 0)),
            scratch_shapes=[pltpu.VMEM((8, LANES), jnp.float32)],
        ),
        # Leading axis splits row blocks across TensorCores (v7x); the trailing
        # axis carries the accumulator -> "arbitrary".
        compiler_params=pltpu.CompilerParams(
            dimension_semantics=("parallel", "arbitrary"),
        ),
    )(consts, x2d, y2d)

    return jnp.sum(partial) / jnp.float32(out_len)


def _ssim1d_ref(x, y, win_size=WIN_SIZE, k1=K1, k2=K2):
    """Plain-JAX reference mirroring the PyTorch module exactly."""
    n = x.shape[0]
    L = n - win_size + 1
    data_range = jnp.max(y)
    c1 = (k1 * data_range) ** 2
    c2 = (k2 * data_range) ** 2
    cov_norm = win_size / (win_size - 1)

    def mov(v):
        idx = jnp.arange(L)[:, None] + jnp.arange(win_size)[None, :]
        return jnp.mean(v[idx], axis=1)

    ux, uy = mov(x), mov(y)
    uxx, uyy, uxy = mov(x * x), mov(y * y), mov(x * y)
    vx = cov_norm * (uxx - ux * ux)
    vy = cov_norm * (uyy - uy * uy)
    vxy = cov_norm * (uxy - ux * uy)
    a1, a2 = 2 * ux * uy + c1, 2 * vxy + c2
    b1, b2 = ux * ux + uy * uy + c1, vx + vy + c2
    return jnp.mean(a1 * a2 / (b1 * b2))


if __name__ == "__main__":
    key = jax.random.PRNGKey(0)
    kx, ky = jax.random.split(key)

    checks = []

    # N = 256: single-block path (250 valid windows).
    x = jax.random.uniform(kx, (256,), dtype=jnp.float32)
    y = jax.random.uniform(ky, (256,), dtype=jnp.float32)
    out1 = jax.block_until_ready(ssim1d(x, y))
    checks.append((out1, _ssim1d_ref(x, y)))

    # N = 200: exercises the ragged-tail padding / lane masking.
    out2 = jax.block_until_ready(ssim1d(x[:200], y[:200]))
    checks.append((out2, _ssim1d_ref(x[:200], y[:200])))

    # N = 2048, tiny blocks, forced 2-way split: exercises multi-step grid
    # accumulation, the parallel split axis, and an all-padding trailing block.
    kx2, ky2 = jax.random.split(ky)
    xl = jax.random.uniform(kx2, (2048,), dtype=jnp.float32)
    yl = jax.random.uniform(ky2, (2048,), dtype=jnp.float32)
    out3 = jax.block_until_ready(ssim1d(xl, yl, block_rows=8, n_splits=2))
    checks.append((out3, _ssim1d_ref(xl, yl)))

    for got, want in checks:
        assert jnp.allclose(got, want, rtol=1e-4, atol=1e-5), (got, want)
    print("KERNEL_OK")
</pallas_src>

<mosaic_0001>
module attributes {stable_mosaic.version = 11 : i64} {
  func.func @kernel(%arg0: i32, %arg1: i32, %arg2: memref<2xf32, #tpu.memory_space<smem>>, %arg3: memref<8x128xf32, #tpu.memory_space<vmem>>, %arg4: memref<8x128xf32, #tpu.memory_space<vmem>>, %arg5: memref<1x8x128xf32, #tpu.memory_space<vmem>>, %arg6: memref<8x128xf32, #tpu.memory_space<vmem>>) attributes {dimension_semantics = [#tpu.dimension_semantics<parallel>, #tpu.dimension_semantics<arbitrary>], iteration_bounds = array<i64: 1, 1>, scalar_prefetch = 1 : i64, scratch_operands = 1 : i64, tpu.core_type = #tpu.core_type<tc>, window_params = [{transform_indices = @transform_0, window_bounds = array<i64: 8, 128>}, {transform_indices = @transform_1, window_bounds = array<i64: 8, 128>}, {transform_indices = @transform_2, window_bounds = array<i64: 1, 8, 128>}]} {
    %c0_i32 = arith.constant 0 : i32
    %0 = arith.cmpi eq, %arg1, %c0_i32 : i32
    %1 = arith.extui %0 : i1 to i32
    %c0_i32_0 = arith.constant 0 : i32
    %2 = arith.cmpi ne, %1, %c0_i32_0 : i32
    scf.if %2 {
      %cst_33 = arith.constant 0.000000e+00 : f32
      %98 = vector.broadcast %cst_33 : f32 to vector<8x128xf32>
      %c0_34 = arith.constant 0 : index
      %c0_35 = arith.constant 0 : index
      %99 = vector.load %arg6[%c0_34, %c0_35] : memref<8x128xf32, #tpu.memory_space<vmem>>, vector<8x128xf32>
      tpu.vector_store %arg6[%c0_34, %c0_35], %98 {strides = array<i32>} : memref<8x128xf32, #tpu.memory_space<vmem>>, vector<8x128xf32>,
    } else {
    }
    %c0 = arith.constant 0 : index
    %3 = memref.load %arg2[%c0] : memref<2xf32, #tpu.memory_space<smem>>
    %c1 = arith.constant 1 : index
    %4 = memref.load %arg2[%c1] : memref<2xf32, #tpu.memory_space<smem>>
    %c0_1 = arith.constant 0 : index
    %c0_2 = arith.constant 0 : index
    %5 = vector.load %arg3[%c0_1, %c0_2] : memref<8x128xf32, #tpu.memory_space<vmem>>, vector<8x128xf32>
    %c0_3 = arith.constant 0 : index
    %c0_4 = arith.constant 0 : index
    %6 = vector.load %arg4[%c0_3, %c0_4] : memref<8x128xf32, #tpu.memory_space<vmem>>, vector<8x128xf32>
    %c127_i32 = arith.constant 127 : i32
    %7 = tpu.dynamic_rotate %5 by %c127_i32 dim 1 : vector<8x128xf32>, i32 -> vector<8x128xf32>
    %8 = arith.addf %5, %7 : vector<8x128xf32>
    %c126_i32 = arith.constant 126 : i32
    %9 = tpu.dynamic_rotate %8 by %c126_i32 dim 1 : vector<8x128xf32>, i32 -> vector<8x128xf32>
    %10 = arith.addf %8, %9 : vector<8x128xf32>
    %c124_i32 = arith.constant 124 : i32
    %11 = tpu.dynamic_rotate %8 by %c124_i32 dim 1 : vector<8x128xf32>, i32 -> vector<8x128xf32>
    %12 = arith.addf %10, %11 : vector<8x128xf32>
    %c122_i32 = arith.constant 122 : i32
    %13 = tpu.dynamic_rotate %5 by %c122_i32 dim 1 : vector<8x128xf32>, i32 -> vector<8x128xf32>
    %14 = arith.addf %12, %13 : vector<8x128xf32>
    %c127_i32_5 = arith.constant 127 : i32
    %15 = tpu.dynamic_rotate %6 by %c127_i32_5 dim 1 : vector<8x128xf32>, i32 -> vector<8x128xf32>
    %16 = arith.addf %6, %15 : vector<8x128xf32>
    %c126_i32_6 = arith.constant 126 : i32
    %17 = tpu.dynamic_rotate %16 by %c126_i32_6 dim 1 : vector<8x128xf32>, i32 -> vector<8x128xf32>
    %18 = arith.addf %16, %17 : vector<8x128xf32>
    %c124_i32_7 = arith.constant 124 : i32
    %19 = tpu.dynamic_rotate %16 by %c124_i32_7 dim 1 : vector<8x128xf32>, i32 -> vector<8x128xf32>
    %20 = arith.addf %18, %19 : vector<8x128xf32>
    %c122_i32_8 = arith.constant 122 : i32
    %21 = tpu.dynamic_rotate %6 by %c122_i32_8 dim 1 : vector<8x128xf32>, i32 -> vector<8x128xf32>
    %22 = arith.addf %20, %21 : vector<8x128xf32>
    %23 = arith.mulf %5, %5 : vector<8x128xf32>
    %c127_i32_9 = arith.constant 127 : i32
    %24 = tpu.dynamic_rotate %23 by %c127_i32_9 dim 1 : vector<8x128xf32>, i32 -> vector<8x128xf32>
    %25 = arith.addf %23, %24 : vector<8x128xf32>
    %c126_i32_10 = arith.constant 126 : i32
    %26 = tpu.dynamic_rotate %25 by %c126_i32_10 dim 1 : vector<8x128xf32>, i32 -> vector<8x128xf32>
    %27 = arith.addf %25, %26 : vector<8x128xf32>
    %c124_i32_11 = arith.constant 124 : i32
    %28 = tpu.dynamic_rotate %25 by %c124_i32_11 dim 1 : vector<8x128xf32>, i32 -> vector<8x128xf32>
    %29 = arith.addf %27, %28 : vector<8x128xf32>
    %c122_i32_12 = arith.constant 122 : i32
    %30 = tpu.dynamic_rotate %23 by %c122_i32_12 dim 1 : vector<8x128xf32>, i32 -> vector<8x128xf32>
    %31 = arith.addf %29, %30 : vector<8x128xf32>
    %32 = arith.mulf %6, %6 : vector<8x128xf32>
    %c127_i32_13 = arith.constant 127 : i32
    %33 = tpu.dynamic_rotate %32 by %c127_i32_13 dim 1 : vector<8x128xf32>, i32 -> vector<8x128xf32>
    %34 = arith.addf %32, %33 : vector<8x128xf32>
    %c126_i32_14 = arith.constant 126 : i32
    %35 = tpu.dynamic_rotate %34 by %c126_i32_14 dim 1 : vector<8x128xf32>, i32 -> vector<8x128xf32>
    %36 = arith.addf %34, %35 : vector<8x128xf32>
    %c124_i32_15 = arith.constant 124 : i32
    %37 = tpu.dynamic_rotate %34 by %c124_i32_15 dim 1 : vector<8x128xf32>, i32 -> vector<8x128xf32>
    %38 = arith.addf %36, %37 : vector<8x128xf32>
    %c122_i32_16 = arith.constant 122 : i32
    %39 = tpu.dynamic_rotate %32 by %c122_i32_16 dim 1 : vector<8x128xf32>, i32 -> vector<8x128xf32>
    %40 = arith.addf %38, %39 : vector<8x128xf32>
    %41 = arith.mulf %5, %6 : vector<8x128xf32>
    %c127_i32_17 = arith.constant 127 : i32
    %42 = tpu.dynamic_rotate %41 by %c127_i32_17 dim 1 : vector<8x128xf32>, i32 -> vector<8x128xf32>
    %43 = arith.addf %41, %42 : vector<8x128xf32>
    %c126_i32_18 = arith.constant 126 : i32
    %44 = tpu.dynamic_rotate %43 by %c126_i32_18 dim 1 : vector<8x128xf32>, i32 -> vector<8x128xf32>
    %45 = arith.addf %43, %44 : vector<8x128xf32>
    %c124_i32_19 = arith.constant 124 : i32
    %46 = tpu.dynamic_rotate %43 by %c124_i32_19 dim 1 : vector<8x128xf32>, i32 -> vector<8x128xf32>
    %47 = arith.addf %45, %46 : vector<8x128xf32>
    %c122_i32_20 = arith.constant 122 : i32
    %48 = tpu.dynamic_rotate %41 by %c122_i32_20 dim 1 : vector<8x128xf32>, i32 -> vector<8x128xf32>
    %49 = arith.addf %47, %48 : vector<8x128xf32>
    %50 = arith.mulf %14, %14 : vector<8x128xf32>
    %51 = arith.mulf %22, %22 : vector<8x128xf32>
    %52 = arith.mulf %14, %22 : vector<8x128xf32>
    %cst = arith.constant 2.000000e+00 : f32
    %53 = vector.broadcast %cst : f32 to vector<8x128xf32>
    %54 = arith.mulf %53, %52 : vector<8x128xf32>
    %55 = vector.broadcast %3 : f32 to vector<8x128xf32>
    %56 = arith.addf %54, %55 : vector<8x128xf32>
    %57 = arith.addf %50, %51 : vector<8x128xf32>
    %58 = vector.broadcast %3 : f32 to vector<8x128xf32>
    %59 = arith.addf %57, %58 : vector<8x128xf32>
    %cst_21 = arith.constant 7.000000e+00 : f32
    %60 = vector.broadcast %cst_21 : f32 to vector<8x128xf32>
    %61 = arith.mulf %60, %49 : vector<8x128xf32>
    %62 = arith.subf %61, %52 : vector<8x128xf32>
    %cst_22 = arith.constant 2.33333325 : f32
    %63 = vector.broadcast %cst_22 : f32 to vector<8x128xf32>
    %64 = arith.mulf %63, %62 : vector<8x128xf32>
    %65 = vector.broadcast %4 : f32 to vector<8x128xf32>
    %66 = arith.addf %64, %65 : vector<8x128xf32>
    %67 = arith.addf %31, %40 : vector<8x128xf32>
    %cst_23 = arith.constant 7.000000e+00 : f32
    %68 = vector.broadcast %cst_23 : f32 to vector<8x128xf32>
    %69 = arith.mulf %68, %67 : vector<8x128xf32>
    %70 = arith.addf %50, %51 : vector<8x128xf32>
    %71 = arith.subf %69, %70 : vector<8x128xf32>
    %cst_24 = arith.constant 1.16666663 : f32
    %72 = vector.broadcast %cst_24 : f32 to vector<8x128xf32>
    %73 = arith.mulf %72, %71 : vector<8x128xf32>
    %74 = vector.broadcast %4 : f32 to vector<8x128xf32>
    %75 = arith.addf %73, %74 : vector<8x128xf32>
    %76 = arith.mulf %56, %66 : vector<8x128xf32>
    %77 = arith.mulf %59, %75 : vector<8x128xf32>
    %78 = tpu.reciprocal %77 {approx = true} : vector<8x128xf32> -> vector<8x128xf32>
    %79 = arith.mulf %77, %78 : vector<8x128xf32>
    %cst_25 = arith.constant 2.000000e+00 : f32
    %80 = vector.broadcast %cst_25 : f32 to vector<8x128xf32>
    %81 = arith.subf %80, %79 : vector<8x128xf32>
    %82 = arith.mulf %78, %81 : vector<8x128xf32>
    %83 = arith.mulf %76, %82 : vector<8x128xf32>
    %84 = tpu.iota {dimensions = array<i32: 1>} : vector<8x128xi32>
    %c122_i32_26 = arith.constant 122 : i32
    %85 = vector.broadcast %c122_i32_26 : i32 to vector<8x128xi32>
    %86 = arith.cmpi slt, %84, %85 : vector<8x128xi32>
    %c1_i32 = arith.constant 1 : i32
    %87 = arith.muli %arg0, %c1_i32 : i32
    %88 = arith.addi %87, %arg1 : i32
    %c0_i32_27 = arith.constant 0 : i32
    %89 = arith.cmpi slt, %88, %c0_i32_27 : i32
    %90 = arith.extui %89 : i1 to i32
    %c0_i32_28 = arith.constant 0 : i32
    %91 = arith.cmpi ne, %90, %c0_i32_28 : i32
    scf.if %91 {
      %cst_33 = arith.constant 0.000000e+00 : f32
      %98 = vector.broadcast %cst_33 : f32 to vector<8x128xf32>
      %99 = arith.select %86, %83, %98 : vector<8x128xi1>, vector<8x128xf32>
      %c0_34 = arith.constant 0 : index
      %c0_35 = arith.constant 0 : index
      %100 = vector.load %arg6[%c0_34, %c0_35] : memref<8x128xf32, #tpu.memory_space<vmem>>, vector<8x128xf32>
      %101 = vector.shape_cast %99 : vector<8x128xf32> to vector<1x8x128xf32>
      %cst_36 = arith.constant dense<0.000000e+00> : vector<8x128xf32>
      %102 = vector.multi_reduction <add>, %101, %cst_36 [0] : vector<1x8x128xf32> to vector<8x128xf32>
      %103 = arith.addf %100, %102 : vector<8x128xf32>
      %c0_37 = arith.constant 0 : index
      %c0_38 = arith.constant 0 : index
      %104 = vector.load %arg6[%c0_37, %c0_38] : memref<8x128xf32, #tpu.memory_space<vmem>>, vector<8x128xf32>
      tpu.vector_store %arg6[%c0_37, %c0_38], %103 {strides = array<i32>} : memref<8x128xf32, #tpu.memory_space<vmem>>, vector<8x128xf32>,
    } else {
    }
    %c0_i32_29 = arith.constant 0 : i32
    %92 = arith.cmpi sge, %88, %c0_i32_29 : i32
    %93 = arith.extui %92 : i1 to i32
    %c0_i32_30 = arith.constant 0 : i32
    %94 = arith.cmpi ne, %93, %c0_i32_30 : i32
    scf.if %94 {
      %98 = tpu.iota {dimensions = array<i32: 0>} : vector<8x128xi32>
      %c8_i32 = arith.constant 8 : i32
      %99 = arith.muli %88, %c8_i32 : i32
      %100 = vector.broadcast %99 : i32 to vector<8x128xi32>
      %101 = arith.addi %100, %98 : vector<8x128xi32>
      %c122_i32_33 = arith.constant 122 : i32
      %102 = vector.broadcast %c122_i32_33 : i32 to vector<8x128xi32>
      %103 = arith.muli %101, %102 : vector<8x128xi32>
      %104 = arith.addi %103, %84 : vector<8x128xi32>
      %c250_i32 = arith.constant 250 : i32
      %105 = vector.broadcast %c250_i32 : i32 to vector<8x128xi32>
      %106 = arith.cmpi slt, %104, %105 : vector<8x128xi32>
      %107 = arith.andi %86, %106 : vector<8x128xi1>
      %cst_34 = arith.constant 0.000000e+00 : f32
      %108 = vector.broadcast %cst_34 : f32 to vector<8x128xf32>
      %109 = arith.select %107, %83, %108 : vector<8x128xi1>, vector<8x128xf32>
      %c0_35 = arith.constant 0 : index
      %c0_36 = arith.constant 0 : index
      %110 = vector.load %arg6[%c0_35, %c0_36] : memref<8x128xf32, #tpu.memory_space<vmem>>, vector<8x128xf32>
      %111 = vector.shape_cast %109 : vector<8x128xf32> to vector<1x8x128xf32>
      %cst_37 = arith.constant dense<0.000000e+00> : vector<8x128xf32>
      %112 = vector.multi_reduction <add>, %111, %cst_37 [0] : vector<1x8x128xf32> to vector<8x128xf32>
      %113 = arith.addf %110, %112 : vector<8x128xf32>
      %c0_38 = arith.constant 0 : index
      %c0_39 = arith.constant 0 : index
      %114 = vector.load %arg6[%c0_38, %c0_39] : memref<8x128xf32, #tpu.memory_space<vmem>>, vector<8x128xf32>
      tpu.vector_store %arg6[%c0_38, %c0_39], %113 {strides = array<i32>} : memref<8x128xf32, #tpu.memory_space<vmem>>, vector<8x128xf32>,
    } else {
    }
    %c0_i32_31 = arith.constant 0 : i32
    %95 = arith.cmpi eq, %arg1, %c0_i32_31 : i32
    %96 = arith.extui %95 : i1 to i32
    %c0_i32_32 = arith.constant 0 : i32
    %97 = arith.cmpi ne, %96, %c0_i32_32 : i32
    scf.if %97 {
      %c0_33 = arith.constant 0 : index
      %c0_34 = arith.constant 0 : index
      %98 = vector.load %arg6[%c0_33, %c0_34] : memref<8x128xf32, #tpu.memory_space<vmem>>, vector<8x128xf32>
      %99 = vector.shape_cast %98 : vector<8x128xf32> to vector<1x8x128xf32>
      %c0_35 = arith.constant 0 : index
      %c0_36 = arith.constant 0 : index
      %c0_37 = arith.constant 0 : index
      %100 = vector.load %arg5[%c0_35, %c0_36, %c0_37] : memref<1x8x128xf32, #tpu.memory_space<vmem>>, vector<1x8x128xf32>
      tpu.vector_store %arg5[%c0_35, %c0_36, %c0_37], %99 {strides = array<i32>} : memref<1x8x128xf32, #tpu.memory_space<vmem>>, vector<1x8x128xf32>,
    } else {
    }
    return
  }
  func.func @transform_0(%arg0: i32, %arg1: i32, %arg2: memref<2xf32, #tpu.memory_space<smem>>) -> (i32, i32) {
    %c1_i32 = arith.constant 1 : i32
    %0 = arith.muli %arg0, %c1_i32 : i32
    %1 = arith.addi %0, %arg1 : i32
    %c0_i32 = arith.constant 0 : i32
    %c0_i32_0 = arith.constant 0 : i32
    return %1, %c0_i32 : i32, i32
  }
  func.func @transform_1(%arg0: i32, %arg1: i32, %arg2: memref<2xf32, #tpu.memory_space<smem>>) -> (i32, i32) {
    %c1_i32 = arith.constant 1 : i32
    %0 = arith.muli %arg0, %c1_i32 : i32
    %1 = arith.addi %0, %arg1 : i32
    %c0_i32 = arith.constant 0 : i32
    %c0_i32_0 = arith.constant 0 : i32
    return %1, %c0_i32 : i32, i32
  }
  func.func @transform_2(%arg0: i32, %arg1: i32, %arg2: memref<2xf32, #tpu.memory_space<smem>>) -> (i32, i32, i32) {
    %c0_i32 = arith.constant 0 : i32
    %c0_i32_0 = arith.constant 0 : i32
    %c0_i32_1 = arith.constant 0 : i32
    return %arg0, %c0_i32, %c0_i32_0 : i32, i32, i32
  }
}

</mosaic_0001>

<llo_original>
// kernel: tpu_custom_call.1
$region0: #{tpu_custom_call.1}
  #allocation0 [shape = 'u32[]', space=smem, size = 0x4, offset = 0x4, fixed_abs, tag = 'smem constant byte address 0x4 - core index']
  #allocation1 [shape = 'u32[144,128]{1,0:T(1,128)}', space=vmem, size = 0x12000, scoped, tag = 'internal scratch']
  #allocation2 [shape = 'f32[8,128]{1,0:T(8,128)}', space=vmem, size = 0x1000, scoped, tag = 'scratch operand']
  #allocation3 [shape = 's32[1]{0}', space=sflag, size = 0x4, scoped, tag = 'scoped memory for tpu_custom_call.1']
  #allocation4 [shape = 'u8[512]{0}', space=smem, size = 0x200, scoped, tag = 'prefetched SMEM operand 0']
  %s0 = inlined_call_operand.hbm [shape: f32[2], index: 0, kind: input, shape index: {}]
  %s1 = inlined_call_operand.hbm [shape: f32[8,128], index: 1, kind: input, shape index: {}]
  %s2 = inlined_call_operand.hbm [shape: f32[8,128], index: 2, kind: input, shape index: {}]
  %s3 = inlined_call_operand.hbm [shape: f32[1,8,128], index: 3, kind: output, shape index: {}]
  %s4 = sld [smem:[#allocation0]]
  $region42: #{tpu_custom_call.1} parent=0
    _
  %s6 = ssub.s32 1, %s4
  %s7 = scalar_select 0, %s6, %s4
  %9 = dma.hbm_to_smem %s0, 16, [#allocation4], [#allocation3]
  %10 = dma.done [#allocation3], 16
  %11 = sfence
  $region1: #{tpu_custom_call.1} parent=0
    #allocation5 [shape = 'u8[4096]{0}', space=vmem, size = 0x1000, scoped, tag = 'input window, operand 1, single buffered']
    #allocation6 [shape = 's32[1]{0}', space=sflag, size = 0x4, scoped, tag = 'scoped memory for tpu_custom_call.1']
    #allocation7 [shape = 's32[1]{0}', space=sflag, size = 0x4, scoped, tag = 'scoped memory for tpu_custom_call.1']
    #allocation8 [shape = 'u8[4096]{0}', space=vmem, size = 0x1000, scoped, tag = 'input window, operand 2, single buffered']
    #allocation9 [shape = 's32[1]{0}', space=sflag, size = 0x4, scoped, tag = 'scoped memory for tpu_custom_call.1']
    #allocation10 [shape = 'u8[4096]{0}', space=vmem, size = 0x1000, scoped, tag = 'output window, operand 0, single buffered']
    %12 = vsyncpa [#allocation6], 0
    %13 = vsyncpa [#allocation9], 0
    %14 = vsyncpa [#allocation7], 0
    // Predicated region
    $region2: #{tpu_custom_call.1} parent=1 // pred_check
      _
    $region3: #{tpu_custom_call.1} parent=1 // pred_check_branch
      %16 = sbr.rel (0) target = $region5
    $region4: #{tpu_custom_call.1} parent=1 // pred_region
      %s17 = sadd.s32 0, 0
      %s19 = ssub.s32 128, 128
      %20 = vsyncadd [#allocation6], %s19
      %s21 = smul.addr %s17, 128
      %s22 = scalar_lea.hbm %s1, %s21
      %s24 = sshll.u32 [#allocation5], 4
      %s25 = int_to_ptr.vmem [resolvable:$true] %s24
      %27 = dma.hbm_to_vmem [thread:$0]  %s22, 128, %s25, [#allocation6]
    $region5: #{tpu_custom_call.1} parent=1 // pred_fallthru
      _
    // Predicated region
    $region6: #{tpu_custom_call.1} parent=1 // pred_check
      _
    $region7: #{tpu_custom_call.1} parent=1 // pred_check_branch
      %29 = sbr.rel (0) target = $region9
    $region8: #{tpu_custom_call.1} parent=1 // pred_region
      %s30 = sadd.s32 0, 0
      %s32 = ssub.s32 128, 128
      %33 = vsyncadd [#allocation9], %s32
      %s34 = smul.addr %s30, 128
      %s35 = scalar_lea.hbm %s2, %s34
      %s37 = sshll.u32 [#allocation8], 4
      %s38 = int_to_ptr.vmem [resolvable:$true] %s37
      %40 = dma.hbm_to_vmem [thread:$0]  %s35, 128, %s38, [#allocation9]
    $region9: #{tpu_custom_call.1} parent=1 // pred_fallthru
      _
    // Predicated region
    $region10: #{tpu_custom_call.1} parent=1 // pred_check
      _
    $region11: #{tpu_custom_call.1} parent=1 // pred_check_branch
      %42 = sbr.rel (0) target = $region13
    $region12: #{tpu_custom_call.1} parent=1 // pred_region
      %43 = dma.done [#allocation6], 128
    $region13: #{tpu_custom_call.1} parent=1 // pred_fallthru
      _
    // Predicated region
    $region14: #{tpu_custom_call.1} parent=1 // pred_check
      _
    $region15: #{tpu_custom_call.1} parent=1 // pred_check_branch
      %45 = sbr.rel (0) target = $region17
    $region16: #{tpu_custom_call.1} parent=1 // pred_region
      %46 = dma.done [#allocation9], 128
    $region17: #{tpu_custom_call.1} parent=1 // pred_fallthru
      _
    %s47 = sadd.s32 0, 0
    %s48 = sadd.s32 0, 0
    %p49 = scmp.eq.s32.totalorder 0, 0
    // Predicated region
    $region18: #{tpu_custom_call.1} parent=1 // pred_check
      %p50 = pneg %p49
    $region19: #{tpu_custom_call.1} parent=1 // pred_check_branch
      %52 = sbr.rel (%p50) target = $region21
    $region20: #{tpu_custom_call.1} parent=1 // pred_region
      %53 = vst [vmem:[#allocation2] sm:$0xff] 0.0
    $region21: #{tpu_custom_call.1} parent=1 // pred_fallthru
      _
    %s54 = sld [smem:[#allocation4]]
    %s55 = sld [smem:[#allocation4 + $0x1]]
    %v56 = vld [vmem:[#allocation5] sm:$0xff]
    %v57 = vld [vmem:[#allocation8] sm:$0xff]
    %58 = vrot.lane.b32.xlu0 %v56, 127
    %v59 = vpop.permute.xlu0 %58
    %v60 = vadd.f32 %v56, %v59
    %61 = vrot.lane.b32.xlu0 %v60, 126
    %v62 = vpop.permute.xlu0 %61
    %v63 = vadd.f32 %v60, %v62
    %64 = vrot.lane.b32.xlu0 %v60, 124
    %v65 = vpop.permute.xlu0 %64
    %v66 = vadd.f32 %v63, %v65
    %67 = vrot.lane.b32.xlu0 %v56, 122
    %v68 = vpop.permute.xlu0 %67
    %v69 = vadd.f32 %v66, %v68
    %70 = vrot.lane.b32.xlu0 %v57, 127
    %v71 = vpop.permute.xlu0 %70
    %v72 = vadd.f32 %v57, %v71
    %73 = vrot.lane.b32.xlu0 %v72, 126
    %v74 = vpop.permute.xlu0 %73
    %v75 = vadd.f32 %v72, %v74
    %76 = vrot.lane.b32.xlu0 %v72, 124
    %v77 = vpop.permute.xlu0 %76
    %v78 = vadd.f32 %v75, %v77
    %79 = vrot.lane.b32.xlu0 %v57, 122
    %v80 = vpop.permute.xlu0 %79
    %v81 = vadd.f32 %v78, %v80
    %v82 = vmul.f32 %v56, %v56
    %83 = vrot.lane.b32.xlu0 %v82, 127
    %v84 = vpop.permute.xlu0 %83
    %v85 = vadd.f32 %v82, %v84
    %86 = vrot.lane.b32.xlu0 %v85, 126
    %v87 = vpop.permute.xlu0 %86
    %v88 = vadd.f32 %v85, %v87
    %89 = vrot.lane.b32.xlu0 %v85, 124
    %v90 = vpop.permute.xlu0 %89
    %v91 = vadd.f32 %v88, %v90
    %92 = vrot.lane.b32.xlu0 %v82, 122
    %v93 = vpop.permute.xlu0 %92
    %v94 = vadd.f32 %v91, %v93
    %v95 = vmul.f32 %v57, %v57
    %96 = vrot.lane.b32.xlu0 %v95, 127
    %v97 = vpop.permute.xlu0 %96
    %v98 = vadd.f32 %v95, %v97
    %99 = vrot.lane.b32.xlu0 %v98, 126
    %v100 = vpop.permute.xlu0 %99
    %v101 = vadd.f32 %v98, %v100
    %102 = vrot.lane.b32.xlu0 %v98, 124
    %v103 = vpop.permute.xlu0 %102
    %v104 = vadd.f32 %v101, %v103
    %105 = vrot.lane.b32.xlu0 %v95, 122
    %v106 = vpop.permute.xlu0 %105
    %v107 = vadd.f32 %v104, %v106
    %v108 = vmul.f32 %v56, %v57
    %109 = vrot.lane.b32.xlu0 %v108, 127
    %v110 = vpop.permute.xlu0 %109
    %v111 = vadd.f32 %v108, %v110
    %112 = vrot.lane.b32.xlu0 %v111, 126
    %v113 = vpop.permute.xlu0 %112
    %v114 = vadd.f32 %v111, %v113
    %115 = vrot.lane.b32.xlu0 %v111, 124
    %v116 = vpop.permute.xlu0 %115
    %v117 = vadd.f32 %v114, %v116
    %118 = vrot.lane.b32.xlu0 %v108, 122
    %v119 = vpop.permute.xlu0 %118
    %v120 = vadd.f32 %v117, %v119
    %v121 = vmul.f32 %v69, %v69
    %v122 = vmul.f32 %v81, %v81
    %v123 = vmul.f32 %v69, %v81
    %v124 = vmul.f32 %v123, 2.0
    %v125 = vstv %s54
    %v126 = vadd.f32 %v124, %v125
    %v127 = vadd.f32 %v121, %v122
    %v128 = vadd.f32 %v127, %v125
    %v129 = vmul.f32 %v120, 7.0
    %v130 = vsub.f32 %v129, %v123
    %v131 = vmul.f32 %v130, 2.3333333
    %v132 = vstv %s55
    %v133 = vadd.f32 %v131, %v132
    %v134 = vadd.f32 %v94, %v107
    %v135 = vmul.f32 %v134, 7.0
    %v136 = vsub.f32 %v135, %v127
    %v137 = vmul.f32 %v136, 1.1666666
    %v138 = vadd.f32 %v137, %v132
    %v139 = vmul.f32 %v126, %v133
    %v140 = vmul.f32 %v128, %v138
    %v141 = vrcp.pop %v140
    %v142 = vmul.f32 %v140, %v141
    %v143 = vsub.f32 2.0, %v142
    %v144 = vmul.f32 %v141, %v143
    %v145 = vmul.f32 %v139, %v144
    %v146 = vlaneseq
    %v147 = vand.u32 %v146, 127
    %vm148 = vcmp.lt.s32.totalorder %v147, 122
    %s149 = sadd.s32 0, 0
    %p150 = scmp.lt.s32.totalorder %s149, 0
    // Predicated region
    $region22: #{tpu_custom_call.1} parent=1 // pred_check
      %p151 = pneg %p150
    $region23: #{tpu_custom_call.1} parent=1 // pred_check_branch
      %153 = sbr.rel (%p151) target = $region25
    $region24: #{tpu_custom_call.1} parent=1 // pred_region
      %v154 = vsel %vm148, %v145, 0.0
      %v155 = vld [vmem:[#allocation2] sm:$0xff]
      %v156 = vadd.f32 %v154, 0.0
      %v157 = vadd.f32 %v155, %v156
      %158 = vst [vmem:[#allocation2] sm:$0xff] %v157
    $region25: #{tpu_custom_call.1} parent=1 // pred_fallthru
      _
    %p159 = scmp.ge.s32.totalorder %s149, 0
    // Predicated region
    $region26: #{tpu_custom_call.1} parent=1 // pred_check
      %p160 = pneg %p159
    $region27: #{tpu_custom_call.1} parent=1 // pred_check_branch
      %162 = sbr.rel (%p160) target = $region29
    $region28: #{tpu_custom_call.1} parent=1 // pred_region
      %v163 = vlaneseq
      %v164 = vshrl.u32 %v163, 7
      %s165 = smul.u32 %s149, 8
      %v166 = vstv %s165
      %v167 = vadd.s32 %v166, %v164
      %v168 = vmul.u32 %v167, 122
      %v169 = vadd.s32 %v168, %v147
      %vm170 = vcmp.lt.s32.totalorder %v169, 250
      %vm171 = vmand %vm148, %vm170
      %v172 = vsel %vm171, %v145, 0.0
      %v173 = vld [vmem:[#allocation2] sm:$0xff]
      %v174 = vadd.f32 %v172, 0.0
      %v175 = vadd.f32 %v173, %v174
      %176 = vst [vmem:[#allocation2] sm:$0xff] %v175
    $region29: #{tpu_custom_call.1} parent=1 // pred_fallthru
      _
    // Predicated region
    $region30: #{tpu_custom_call.1} parent=1 // pred_check
      %p177 = pneg %p49
    $region31: #{tpu_custom_call.1} parent=1 // pred_check_branch
      %179 = sbr.rel (%p177) target = $region33
    $region32: #{tpu_custom_call.1} parent=1 // pred_region
      %v180 = vld [vmem:[#allocation2] sm:$0xff]
      %181 = vst [vmem:[#allocation10] sm:$0xff] %v180
    $region33: #{tpu_custom_call.1} parent=1 // pred_fallthru
      _
    // Predicated region
    $region34: #{tpu_custom_call.1} parent=1 // pred_check
      _
    $region35: #{tpu_custom_call.1} parent=1 // pred_check_branch
      %183 = sbr.rel (0) target = $region37
    $region36: #{tpu_custom_call.1} parent=1 // pred_region
      %s185 = ssub.s32 128, 128
      %186 = vsyncadd [#allocation7], %s185
      %s188 = sshll.u32 [#allocation10], 4
      %s189 = int_to_ptr.vmem [resolvable:$true] %s188
      %191 = dma.vmem_to_hbm [thread:$0]  %s189, 128, %s3, [#allocation7]
    $region37: #{tpu_custom_call.1} parent=1 // pred_fallthru
      _
    // Predicated region
    $region38: #{tpu_custom_call.1} parent=1 // pred_check
      _
    $region39: #{tpu_custom_call.1} parent=1 // pred_check_branch
      %193 = sbr.rel (0) target = $region41
    $region40: #{tpu_custom_call.1} parent=1 // pred_region
      %194 = dma.done [#allocation7], 128
    $region41: #{tpu_custom_call.1} parent=1 // pred_fallthru
      _
    %195 = vsyncpa [#allocation6], 1
    %196 = vsyncpa [#allocation9], 1
    %197 = vsyncpa [#allocation7], 1

</llo_original>
